<compile_context>
chip_gen: v6e
topology: v6e:2x2x1
jax: 0.10.0
libtpu: 0.0.40
codegen_flags: <defaults>
</compile_context>

<pallas_src>
import functools
import math

import jax
import jax.numpy as jnp
from jax.experimental import pallas as pl
from jax.experimental.pallas import tpu as pltpu

_LANE = 128
# Rows per tile. 2 buffers * (n+1) refs * TM * 128 lanes * 4 B = 4 KiB * (n+1) * TM / 512;
# for n<=7 and TM=1024 this is <= 8 MiB, safe under 16/32 MiB default scoped VMEM.
_MAX_TM = 1024


def _sum_kernel(n, weighted, *refs):
    """refs = ([w_ref] if weighted) + n input refs + output ref.

    w_ref : SMEM f32[n-1]   (scalar-prefetched; weight for terms 1..n-1)
    x_ref : VMEM (TM, 128)
    o_ref : VMEM (TM, 128)
    """
    if weighted:
        w_ref = refs[0]
        x_refs = refs[1:1 + n]
        o_ref = refs[1 + n]
    else:
        w_ref = None
        x_refs = refs[:n]
        o_ref = refs[n]

    acc = x_refs[0][...].astype(jnp.float32)
    for i in range(1, n):  # n is a small static Python int -> fully unrolled
        term = x_refs[i][...].astype(jnp.float32)
        if weighted:
            term = term * w_ref[i - 1]
        acc = acc + term
    o_ref[...] = acc.astype(o_ref.dtype)


def _sum_2d(mats, w, dtype):
    """Weighted sum of n lane-dense (M, 128) matrices via a gridded kernel."""
    n = len(mats)
    M = mats[0].shape[0]
    # Tile rows: full extent if small, otherwise a multiple-of-8 tile.
    tm = M if M <= _MAX_TM else _MAX_TM
    grid = (pl.cdiv(M, tm),)

    weighted = w is not None
    # index_maps take trailing scalar-prefetch refs positionally -> accept *_.
    blk = pl.BlockSpec((tm, _LANE), lambda i, *_: (i, 0))

    grid_spec = pltpu.PrefetchScalarGridSpec(
        num_scalar_prefetch=1 if weighted else 0,
        grid=grid,
        in_specs=[blk] * n,
        out_specs=blk,
    )

    args = ([w] if weighted else []) + list(mats)
    return pl.pallas_call(
        functools.partial(_sum_kernel, n, weighted),
        out_shape=jax.ShapeDtypeStruct((M, _LANE), dtype),
        grid_spec=grid_spec,
        compiler_params=pltpu.CompilerParams(
            dimension_semantics=("parallel",)),
    )(*args)


def pallas_sum(xs, weight=False, w_param=None):
    """Weighted sum of a list of same-shaped tensors (Sum.forward)."""
    n = len(xs)
    shape = xs[0].shape
    dtype = xs[0].dtype
    total = math.prod(shape)

    if n == 1:
        return xs[0]

    if weight:
        w = (jax.nn.sigmoid(w_param.astype(jnp.float32)) * 2.0).astype(jnp.float32)
    else:
        w = None

    flats = [jnp.reshape(x, (-1,)) for x in xs]

    if total % _LANE == 0:
        # Fast path: free view as (M, 128); no pad / stack / post-slice copies.
        mats = [f.reshape(-1, _LANE) for f in flats]
        out = _sum_2d(mats, w, dtype)
        return out.reshape(shape)

    # Ragged path (numel not a multiple of 128): pad up to lane width, slice back.
    # TODO(synk): could mask the last block in-kernel instead of pad+slice.
    pad = (-total) % _LANE
    mats = [jnp.pad(f, (0, pad)).reshape(-1, _LANE) for f in flats]
    out = _sum_2d(mats, w, dtype)
    return out.reshape(-1)[:total].reshape(shape)


def _ref_sum(xs, weight=False, w_param=None):
    y = xs[0]
    if weight:
        w = jax.nn.sigmoid(w_param.astype(jnp.float32)) * 2.0
        for i in range(1, len(xs)):
            y = y + xs[i] * w[i - 1]
    else:
        for i in range(1, len(xs)):
            y = y + xs[i]
    return y


if __name__ == "__main__":
    key = jax.random.PRNGKey(0)
    n = 3
    B, C, H, W = 2, 4, 16, 16

    keys = jax.random.split(key, n)
    xs = [jax.random.normal(k, (B, C, H, W), dtype=jnp.float32) for k in keys]

    # Deterministic parameter init, same as nn.Parameter(-arange(1., n) / 2)
    w_param = -jnp.arange(1.0, float(n)) / 2.0

    # --- unweighted variant ---
    y_plain = jax.block_until_ready(pallas_sum(xs, weight=False))
    assert jnp.allclose(y_plain, _ref_sum(xs, weight=False), atol=1e-5, rtol=1e-5)

    # --- weighted variant ---
    y_w = jax.block_until_ready(pallas_sum(xs, weight=True, w_param=w_param))
    assert jnp.allclose(y_w, _ref_sum(xs, weight=True, w_param=w_param),
                        atol=1e-5, rtol=1e-5)

    # --- larger input that exercises a multi-step grid (M = 2048 rows) ---
    keys2 = jax.random.split(jax.random.PRNGKey(1), n)
    xs_big = [jax.random.normal(k, (2, 16, 128, 64), dtype=jnp.float32) for k in keys2]
    y_big = jax.block_until_ready(pallas_sum(xs_big, weight=True, w_param=w_param))
    assert jnp.allclose(y_big, _ref_sum(xs_big, weight=True, w_param=w_param),
                        atol=1e-5, rtol=1e-5)

    # --- ragged shape (numel not a multiple of 128) exercises the pad path ---
    keys3 = jax.random.split(jax.random.PRNGKey(2), n)
    xs_rag = [jax.random.normal(k, (2, 3, 5, 7), dtype=jnp.float32) for k in keys3]
    y_rag = jax.block_until_ready(pallas_sum(xs_rag, weight=False))
    assert jnp.allclose(y_rag, _ref_sum(xs_rag, weight=False), atol=1e-5, rtol=1e-5)

    print("KERNEL_OK")
</pallas_src>

<mosaic_0001>
module attributes {stable_mosaic.version = 11 : i64} {
  func.func @_sum_kernel(%arg0: i32, %arg1: memref<16x128xf32, #tpu.memory_space<vmem>>, %arg2: memref<16x128xf32, #tpu.memory_space<vmem>>, %arg3: memref<16x128xf32, #tpu.memory_space<vmem>>, %arg4: memref<16x128xf32, #tpu.memory_space<vmem>>) attributes {dimension_semantics = [#tpu.dimension_semantics<parallel>], iteration_bounds = array<i64: 1>, scalar_prefetch = 0 : i64, scratch_operands = 0 : i64, tpu.core_type = #tpu.core_type<tc>, window_params = [{transform_indices = @transform_0, window_bounds = array<i64: 16, 128>}, {transform_indices = @transform_1, window_bounds = array<i64: 16, 128>}, {transform_indices = @transform_2, window_bounds = array<i64: 16, 128>}, {transform_indices = @transform_3, window_bounds = array<i64: 16, 128>}]} {
    %c0 = arith.constant 0 : index
    %c0_0 = arith.constant 0 : index
    %0 = vector.load %arg1[%c0, %c0_0] : memref<16x128xf32, #tpu.memory_space<vmem>>, vector<16x128xf32>
    %c0_1 = arith.constant 0 : index
    %c0_2 = arith.constant 0 : index
    %1 = vector.load %arg2[%c0_1, %c0_2] : memref<16x128xf32, #tpu.memory_space<vmem>>, vector<16x128xf32>
    %2 = arith.addf %0, %1 : vector<16x128xf32>
    %c0_3 = arith.constant 0 : index
    %c0_4 = arith.constant 0 : index
    %3 = vector.load %arg3[%c0_3, %c0_4] : memref<16x128xf32, #tpu.memory_space<vmem>>, vector<16x128xf32>
    %4 = arith.addf %2, %3 : vector<16x128xf32>
    %c0_5 = arith.constant 0 : index
    %c0_6 = arith.constant 0 : index
    %5 = vector.load %arg4[%c0_5, %c0_6] : memref<16x128xf32, #tpu.memory_space<vmem>>, vector<16x128xf32>
    tpu.vector_store %arg4[%c0_5, %c0_6], %4 {strides = array<i32>} : memref<16x128xf32, #tpu.memory_space<vmem>>, vector<16x128xf32>,
    return
  }
  func.func @transform_0(%arg0: i32) -> (i32, i32) {
    %c0_i32 = arith.constant 0 : i32
    %c0_i32_0 = arith.constant 0 : i32
    return %arg0, %c0_i32 : i32, i32
  }
  func.func @transform_1(%arg0: i32) -> (i32, i32) {
    %c0_i32 = arith.constant 0 : i32
    %c0_i32_0 = arith.constant 0 : i32
    return %arg0, %c0_i32 : i32, i32
  }
  func.func @transform_2(%arg0: i32) -> (i32, i32) {
    %c0_i32 = arith.constant 0 : i32
    %c0_i32_0 = arith.constant 0 : i32
    return %arg0, %c0_i32 : i32, i32
  }
  func.func @transform_3(%arg0: i32) -> (i32, i32) {
    %c0_i32 = arith.constant 0 : i32
    %c0_i32_0 = arith.constant 0 : i32
    return %arg0, %c0_i32 : i32, i32
  }
}

</mosaic_0001>

<llo_original>
// kernel: tpu_custom_call.1
$region0: #{tpu_custom_call.1}
  #allocation0 [shape = 'u32[]', space=smem, size = 0x4, offset = 0x4, fixed_abs, tag = 'smem constant byte address 0x4 - core index']
  #allocation1 [shape = 'u32[144,128]{1,0:T(1,128)}', space=vmem, size = 0x12000, scoped, tag = 'internal scratch']
  %s0 = inlined_call_operand.hbm [shape: f32[16,128], index: 0, kind: input, shape index: {}]
  %s1 = inlined_call_operand.hbm [shape: f32[16,128], index: 1, kind: input, shape index: {}]
  %s2 = inlined_call_operand.hbm [shape: f32[16,128], index: 2, kind: input, shape index: {}]
  %s3 = inlined_call_operand.hbm [shape: f32[16,128], index: 3, kind: output, shape index: {}]
  %s4 = sld [smem:[#allocation0]]
  $region34: #{tpu_custom_call.1} parent=0
    _
  %s6 = ssub.s32 1, %s4
  %s7 = scalar_select 0, %s6, %s4
  $region1: #{tpu_custom_call.1} parent=0
    #allocation2 [shape = 'u8[8192]{0}', space=vmem, size = 0x2000, scoped, tag = 'input window, operand 0, single buffered']
    #allocation3 [shape = 's32[1]{0}', space=sflag, size = 0x4, scoped, tag = 'scoped memory for tpu_custom_call.1']
    #allocation4 [shape = 's32[1]{0}', space=sflag, size = 0x4, scoped, tag = 'scoped memory for tpu_custom_call.1']
    #allocation5 [shape = 'u8[8192]{0}', space=vmem, size = 0x2000, scoped, tag = 'input window, operand 1, single buffered']
    #allocation6 [shape = 's32[1]{0}', space=sflag, size = 0x4, scoped, tag = 'scoped memory for tpu_custom_call.1']
    #allocation7 [shape = 'u8[8192]{0}', space=vmem, size = 0x2000, scoped, tag = 'input window, operand 2, single buffered']
    #allocation8 [shape = 'u8[8192]{0}', space=vmem, size = 0x2000, scoped, tag = 'output window, operand 0, single buffered']
    %8 = vsyncpa [#allocation3], 0
    %9 = vsyncpa [#allocation6], 0
    %10 = vsyncpa [#allocation4], 0
    // Predicated region
    $region2: #{tpu_custom_call.1} parent=1 // pred_check
      _
    $region3: #{tpu_custom_call.1} parent=1 // pred_check_branch
      %12 = sbr.rel (0) target = $region5
    $region4: #{tpu_custom_call.1} parent=1 // pred_region
      %s14 = ssub.s32 256, 256
      %15 = vsyncadd [#allocation3], %s14
      %s16 = sshll.u32 [#allocation2], 4
      %s17 = int_to_ptr.vmem [resolvable:$true] %s16
      %22 = dma.hbm_to_vmem [thread:$0]  %s0, 256, %s17, [#allocation3], 128, 128, 8
    $region5: #{tpu_custom_call.1} parent=1 // pred_fallthru
      _
    // Predicated region
    $region6: #{tpu_custom_call.1} parent=1 // pred_check
      _
    $region7: #{tpu_custom_call.1} parent=1 // pred_check_branch
      %24 = sbr.rel (0) target = $region9
    $region8: #{tpu_custom_call.1} parent=1 // pred_region
      %s26 = ssub.s32 256, 256
      %27 = vsyncadd [#allocation6], %s26
      %s28 = sshll.u32 [#allocation5], 4
      %s29 = int_to_ptr.vmem [resolvable:$true] %s28
      %34 = dma.hbm_to_vmem [thread:$0]  %s1, 256, %s29, [#allocation6], 128, 128, 8
    $region9: #{tpu_custom_call.1} parent=1 // pred_fallthru
      _
    // Predicated region
    $region10: #{tpu_custom_call.1} parent=1 // pred_check
      _
    $region11: #{tpu_custom_call.1} parent=1 // pred_check_branch
      %36 = sbr.rel (0) target = $region13
    $region12: #{tpu_custom_call.1} parent=1 // pred_region
      %s38 = ssub.s32 256, 256
      %39 = vsyncadd [#allocation6], %s38
      %s40 = sshll.u32 [#allocation7], 4
      %s41 = int_to_ptr.vmem [resolvable:$true] %s40
      %46 = dma.hbm_to_vmem [thread:$0]  %s2, 256, %s41, [#allocation6], 128, 128, 8
    $region13: #{tpu_custom_call.1} parent=1 // pred_fallthru
      _
    // Predicated region
    $region14: #{tpu_custom_call.1} parent=1 // pred_check
      _
    $region15: #{tpu_custom_call.1} parent=1 // pred_check_branch
      %48 = sbr.rel (0) target = $region17
    $region16: #{tpu_custom_call.1} parent=1 // pred_region
      %49 = dma.done [#allocation3], 256
    $region17: #{tpu_custom_call.1} parent=1 // pred_fallthru
      _
    // Predicated region
    $region18: #{tpu_custom_call.1} parent=1 // pred_check
      _
    $region19: #{tpu_custom_call.1} parent=1 // pred_check_branch
      %51 = sbr.rel (0) target = $region21
    $region20: #{tpu_custom_call.1} parent=1 // pred_region
      %52 = dma.done [#allocation6], 256
    $region21: #{tpu_custom_call.1} parent=1 // pred_fallthru
      _
    // Predicated region
    $region22: #{tpu_custom_call.1} parent=1 // pred_check
      _
    $region23: #{tpu_custom_call.1} parent=1 // pred_check_branch
      %54 = sbr.rel (0) target = $region25
    $region24: #{tpu_custom_call.1} parent=1 // pred_region
      %55 = dma.done [#allocation6], 256
    $region25: #{tpu_custom_call.1} parent=1 // pred_fallthru
      _
    %v56 = vld [vmem:[#allocation2] sm:$0xff]
    %v57 = vld [vmem:[#allocation2 + $0x8] sm:$0xff]
    %v58 = vld [vmem:[#allocation5] sm:$0xff]
    %v59 = vld [vmem:[#allocation5 + $0x8] sm:$0xff]
    %v60 = vadd.f32 %v56, %v58
    %v61 = vadd.f32 %v57, %v59
    %v62 = vld [vmem:[#allocation7] sm:$0xff]
    %v63 = vld [vmem:[#allocation7 + $0x8] sm:$0xff]
    %v64 = vadd.f32 %v60, %v62
    %v65 = vadd.f32 %v61, %v63
    %66 = vst [vmem:[#allocation8] sm:$0xff] %v64
    %67 = vst [vmem:[#allocation8 + $0x8] sm:$0xff] %v65
    // Predicated region
    $region26: #{tpu_custom_call.1} parent=1 // pred_check
      _
    $region27: #{tpu_custom_call.1} parent=1 // pred_check_branch
      %69 = sbr.rel (0) target = $region29
    $region28: #{tpu_custom_call.1} parent=1 // pred_region
      %s71 = ssub.s32 256, 256
      %72 = vsyncadd [#allocation4], %s71
      %s73 = sshll.u32 [#allocation8], 4
      %s74 = int_to_ptr.vmem [resolvable:$true] %s73
      %79 = dma.vmem_to_hbm [thread:$0]  %s74, 256, %s3, [#allocation4], 128, 128, 8
    $region29: #{tpu_custom_call.1} parent=1 // pred_fallthru
      _
    // Predicated region
    $region30: #{tpu_custom_call.1} parent=1 // pred_check
      _
    $region31: #{tpu_custom_call.1} parent=1 // pred_check_branch
      %81 = sbr.rel (0) target = $region33
    $region32: #{tpu_custom_call.1} parent=1 // pred_region
      %82 = dma.done [#allocation4], 256
    $region33: #{tpu_custom_call.1} parent=1 // pred_fallthru
      _
    %83 = vsyncpa [#allocation3], 1
    %84 = vsyncpa [#allocation6], 1
    %85 = vsyncpa [#allocation4], 1

</llo_original>
